<compile_context>
chip_gen: v5e
topology: v5e:2x2
jax: 0.10.0
libtpu: 0.0.40
codegen_flags: <defaults>
</compile_context>

<pallas_src>
import functools

import jax
import jax.numpy as jnp
from jax.experimental import pallas as pl
from jax.experimental.pallas import tpu as pltpu


_LANE = 128
_MAX_FALLBACK_WIDTH = 8192                 # cap for the ragged-shape 2D view's last dim
_MAX_MIN_BLOCK_BYTES = 14 * 1024 * 1024    # escape hatch for pathological shapes


# ---------------------------------------------------------------------------
# Kernels (elementwise; math in f32 for PyTorch opmath parity, cast back)
# ---------------------------------------------------------------------------
def _h_swish_kernel(x_ref, o_ref):
    x = x_ref[...].astype(jnp.float32)
    o_ref[...] = (x * jnp.clip(x + 3.0, 0.0, 6.0) / 6.0).astype(o_ref.dtype)


def _h_sigmoid_kernel(x_ref, o_ref):
    x = x_ref[...].astype(jnp.float32)
    o_ref[...] = (jnp.clip(x + 3.0, 0.0, 6.0) / 6.0).astype(o_ref.dtype)


def _h_swish_ref(x):
    xf = x.astype(jnp.float32)
    return (xf * jnp.clip(xf + 3.0, 0.0, 6.0) / 6.0).astype(x.dtype)


def _h_sigmoid_ref(x):
    xf = x.astype(jnp.float32)
    return (jnp.clip(xf + 3.0, 0.0, 6.0) / 6.0).astype(x.dtype)


# ---------------------------------------------------------------------------
# Launch helpers
# ---------------------------------------------------------------------------
@functools.lru_cache(maxsize=None)
def _target_block_bytes():
    """Per-grid-step block size, tuned per TPU generation.

    With default double buffering (one input + one output stream) VMEM use is
    ~4x block, which must stay inside the default scoped-VMEM limit:
    16 MiB (v5e) / 32 MiB (v6e, v7x).
    """
    try:
        kind = jax.devices()[0].device_kind.lower()
    except Exception:                      # non-TPU / unusual backends
        return 4 * 1024 * 1024
    if "v7" in kind:
        return 6 * 1024 * 1024             # 24 MiB total: amortizes 3.2 TB/s HBM steps
    if "v6" in kind:
        return 4 * 1024 * 1024             # 16 MiB total: past the v6e roofline knee
    if "v5" in kind and ("lite" in kind or "5e" in kind):
        return 3 * 1024 * 1024 + 512 * 1024   # 14 MiB total, under v5e's 16 MiB limit
    return 3 * 1024 * 1024 + 512 * 1024        # conservative default (v2..v5p, etc.)


def _elementwise_2d(kernel, x2d, block_rows, sublane_mult):
    rows, width = x2d.shape
    if rows <= sublane_mult:
        br = rows                          # full extent: exempt from the 8-row rule
    elif block_rows < rows:
        br = block_rows                    # normal case: >= 2 grid steps automatically
    else:
        # One block would swallow all rows -> force >= 2 grid steps so both v7x
        # TensorCores get work (harmless on single-TC v5e/v6e).
        half = (rows + 1) // 2
        half = ((half + sublane_mult - 1) // sublane_mult) * sublane_mult
        cap = ((rows - 1) // sublane_mult) * sublane_mult
        br = min(half, cap)
    grid = (pl.cdiv(rows, br),)            # partial edge block masked by Pallas
    return pl.pallas_call(
        kernel,
        out_shape=jax.ShapeDtypeStruct((rows, width), x2d.dtype),
        grid_spec=pltpu.PrefetchScalarGridSpec(
            num_scalar_prefetch=0,
            grid=grid,
            in_specs=[pl.BlockSpec((br, width), lambda i: (i, 0))],
            out_specs=pl.BlockSpec((br, width), lambda i: (i, 0)),
        ),
        compiler_params=pltpu.CompilerParams(
            dimension_semantics=("parallel",),   # lets v7x shard grid steps over 2 TCs
        ),
    )(x2d)


def _launch_elementwise(kernel, ref_fn, x):
    """Run an elementwise kernel over an arbitrarily shaped array (e.g. NCHW)."""
    orig_shape = x.shape
    n = x.size
    if n == 0:
        return x
    work = x if x.ndim >= 1 else x.reshape(1)

    itemsize = jnp.dtype(x.dtype).itemsize
    sublane_mult = max(8, 32 // itemsize)  # 8 (32-bit) / 16 (16-bit) / 32 (8-bit)
    target_bytes = _target_block_bytes()

    if n % _LANE == 0:
        # Common case (conv activations): flatten to a lane-dense slab whose width
        # is a large multiple of 128 -> contiguous DMAs and unmasked stores.
        width = _LANE
        for cand in (4096, 2048, 1024, 512, 256):
            if n % cand == 0:
                width = cand
                break
        x2d = work.reshape(n // width, width)        # metadata-only reshape
    else:
        # Ragged total: build a 2D view from the array's own trailing dims
        # (metadata-only). The full-extent last dim is exempt from the 128 rule,
        # so ONE Pallas call covers everything -- no concatenate, no padded copy.
        shape = work.shape
        width = 1
        k = len(shape)
        while k > 0 and width * shape[k - 1] <= _MAX_FALLBACK_WIDTH:
            width *= shape[k - 1]
            k -= 1
        if width == 1:                               # last dim alone exceeds the cap
            width = shape[-1]
        x2d = work.reshape(n // width, width)

    rows = x2d.shape[0]
    padded_width = ((width + _LANE - 1) // _LANE) * _LANE   # VMEM lane padding
    row_bytes = padded_width * itemsize
    min_br = rows if rows <= sublane_mult else sublane_mult
    if min_br * row_bytes > _MAX_MIN_BLOCK_BYTES:
        # TODO(synk): pathological ragged shape (huge, non-128-divisible last dim);
        # the smallest legal block would blow the scoped-VMEM budget, so fall back
        # to plain JAX instead of risking a compile failure.
        return ref_fn(x)

    block_rows = max(
        sublane_mult,
        (target_bytes // row_bytes) // sublane_mult * sublane_mult,
    )
    out2d = _elementwise_2d(kernel, x2d, block_rows, sublane_mult)
    return out2d.reshape(orig_shape)


# ---------------------------------------------------------------------------
# Public API (matches the PyTorch modules' forward passes)
# ---------------------------------------------------------------------------
def h_swish(x):
    """Elementwise Hardswish: x * ReLU6(x + 3) / 6. Any shape, same shape/dtype."""
    return _launch_elementwise(_h_swish_kernel, _h_swish_ref, x)


def h_sigmoid(x):
    """Elementwise hard-sigmoid: ReLU6(x + 3) / 6. Any shape, same shape/dtype."""
    return _launch_elementwise(_h_sigmoid_kernel, _h_sigmoid_ref, x)


if __name__ == "__main__":
    key = jax.random.PRNGKey(0)
    k1, k2, k3 = jax.random.split(key, 3)

    # NCHW input, consistent with the PyTorch module's conv-style usage.
    x = jax.random.normal(k1, (2, 4, 16, 16), dtype=jnp.float32) * 4.0
    y = jax.block_until_ready(h_swish(x))
    assert y.shape == x.shape and y.dtype == x.dtype
    assert jnp.allclose(y, _h_swish_ref(x), atol=1e-6, rtol=1e-5)

    # Dependent h_sigmoid module.
    ys = jax.block_until_ready(h_sigmoid(x))
    assert jnp.allclose(ys, _h_sigmoid_ref(x), atol=1e-6, rtol=1e-5)

    # bf16 input: kernel upcasts to f32 internally (PyTorch opmath parity).
    xb = (jax.random.normal(k2, (2, 4, 16, 16), dtype=jnp.float32) * 4.0).astype(jnp.bfloat16)
    yb = jax.block_until_ready(h_swish(xb))
    assert yb.dtype == jnp.bfloat16
    assert jnp.allclose(yb.astype(jnp.float32),
                        _h_swish_ref(xb).astype(jnp.float32), atol=1e-2, rtol=1e-2)

    # Ragged total size (not a multiple of 128): exercises the single-call
    # trailing-dims path (no concatenate epilogue; partial edge block masked).
    xr = jax.random.normal(k3, (37, 300), dtype=jnp.float32) * 4.0
    yr = jax.block_until_ready(h_swish(xr))
    assert yr.shape == xr.shape
    assert jnp.allclose(yr, _h_swish_ref(xr), atol=1e-6, rtol=1e-5)

    print("KERNEL_OK")
</pallas_src>

<mosaic_0001>
module attributes {stable_mosaic.version = 11 : i64} {
  func.func @_h_swish_kernel(%arg0: i32, %arg1: memref<1x2048xf32, #tpu.memory_space<vmem>>, %arg2: memref<1x2048xf32, #tpu.memory_space<vmem>>) attributes {dimension_semantics = [#tpu.dimension_semantics<parallel>], iteration_bounds = array<i64: 1>, scalar_prefetch = 0 : i64, scratch_operands = 0 : i64, tpu.core_type = #tpu.core_type<tc>, window_params = [{transform_indices = @transform_0, window_bounds = array<i64: 1, 2048>}, {transform_indices = @transform_1, window_bounds = array<i64: 1, 2048>}]} {
    %c0 = arith.constant 0 : index
    %c0_0 = arith.constant 0 : index
    %0 = vector.load %arg1[%c0, %c0_0] : memref<1x2048xf32, #tpu.memory_space<vmem>>, vector<1x2048xf32>
    %cst = arith.constant 3.000000e+00 : f32
    %1 = vector.broadcast %cst : f32 to vector<1x2048xf32>
    %2 = arith.addf %0, %1 : vector<1x2048xf32>
    %cst_1 = arith.constant 0.000000e+00 : f32
    %cst_2 = arith.constant 6.000000e+00 : f32
    %3 = vector.broadcast %cst_1 : f32 to vector<1x2048xf32>
    %4 = arith.maximumf %3, %2 : vector<1x2048xf32>
    %5 = vector.broadcast %cst_2 : f32 to vector<1x2048xf32>
    %6 = arith.minimumf %5, %4 : vector<1x2048xf32>
    %7 = arith.mulf %0, %6 : vector<1x2048xf32>
    %cst_3 = arith.constant 6.000000e+00 : f32
    %8 = vector.broadcast %cst_3 : f32 to vector<1x2048xf32>
    %9 = arith.divf %7, %8 : vector<1x2048xf32>
    %c0_4 = arith.constant 0 : index
    %c0_5 = arith.constant 0 : index
    %10 = vector.load %arg2[%c0_4, %c0_5] : memref<1x2048xf32, #tpu.memory_space<vmem>>, vector<1x2048xf32>
    tpu.vector_store %arg2[%c0_4, %c0_5], %9 {strides = array<i32>} : memref<1x2048xf32, #tpu.memory_space<vmem>>, vector<1x2048xf32>,
    return
  }
  func.func @transform_0(%arg0: i32) -> (i32, i32) {
    %c0_i32 = arith.constant 0 : i32
    %c0_i32_0 = arith.constant 0 : i32
    return %arg0, %c0_i32 : i32, i32
  }
  func.func @transform_1(%arg0: i32) -> (i32, i32) {
    %c0_i32 = arith.constant 0 : i32
    %c0_i32_0 = arith.constant 0 : i32
    return %arg0, %c0_i32 : i32, i32
  }
}

</mosaic_0001>

<llo_original>
// kernel: tpu_custom_call.1
$region0: #{tpu_custom_call.1}
  #allocation0 [shape = 'u32[]', space=smem, size = 0x4, offset = 0x4, fixed_abs, tag = 'smem constant byte address 0x4 - core index']
  #allocation1 [shape = 'u32[72,128]{1,0:T(1,128)}', space=vmem, size = 0x9000, scoped, tag = 'internal scratch']
  %s0 = inlined_call_operand.hbm [shape: f32[1,2048], index: 0, kind: input, shape index: {}]
  %s1 = inlined_call_operand.hbm [shape: f32[1,2048], index: 1, kind: output, shape index: {}]
  %s2 = sld [smem:[#allocation0]]
  $region18: #{tpu_custom_call.1} parent=0
    _
  %s4 = ssub.s32 1, %s2
  %s5 = scalar_select 0, %s4, %s2
  $region1: #{tpu_custom_call.1} parent=0
    #allocation2 [shape = 'u8[8192]{0}', space=vmem, size = 0x2000, scoped, tag = 'input window, operand 0, single buffered']
    #allocation3 [shape = 's32[1]{0}', space=sflag, size = 0x4, scoped, tag = 'scoped memory for tpu_custom_call.1']
    #allocation4 [shape = 's32[1]{0}', space=sflag, size = 0x4, scoped, tag = 'scoped memory for tpu_custom_call.1']
    #allocation5 [shape = 'u8[8192]{0}', space=vmem, size = 0x2000, scoped, tag = 'output window, operand 0, single buffered']
    %6 = vsyncpa [#allocation3], 0
    %7 = vsyncpa [#allocation4], 0
    // Predicated region
    $region2: #{tpu_custom_call.1} parent=1 // pred_check
      _
    $region3: #{tpu_custom_call.1} parent=1 // pred_check_branch
      %9 = sbr.rel (0) target = $region5
    $region4: #{tpu_custom_call.1} parent=1 // pred_region
      %11 = vsyncadd [#allocation3], 0
      %s13 = sshll.u32 %s0, 4
      %s14 = int_to_ptr.hbm [resolvable:$true] %s13
      %s15 = sshll.u32 [#allocation2], 4
      %s16 = int_to_ptr.vmem [resolvable:$true] %s15
      %18 = dma.hbm_to_vmem [thread:$0]  %s14, 256, %s16, [#allocation3]
    $region5: #{tpu_custom_call.1} parent=1 // pred_fallthru
      _
    // Predicated region
    $region6: #{tpu_custom_call.1} parent=1 // pred_check
      _
    $region7: #{tpu_custom_call.1} parent=1 // pred_check_branch
      %20 = sbr.rel (0) target = $region9
    $region8: #{tpu_custom_call.1} parent=1 // pred_region
      %22 = dma.done [#allocation3], 256
    $region9: #{tpu_custom_call.1} parent=1 // pred_fallthru
      _
    %v23 = vld [vmem:[#allocation2] sm:$0xff]
    %v24 = vld [vmem:[#allocation2 + $0x8] sm:$0xff]
    %v25 = vadd.f32 %v23, 3.0
    %v26 = vadd.f32 %v24, 3.0
    %v27 = vmax.f32 %v25, 0.0
    %v28 = vmax.f32 %v26, 0.0
    %v29 = vmin.f32 %v27, 6.0
    %v30 = vmin.f32 %v28, 6.0
    %v31 = vmul.f32 %v23, %v29
    %v32 = vmul.f32 %v24, %v30
    %v33 = vrcp.pop 6.0
    %v34 = vmul.f32 6.0, %v33
    %v35 = vsub.f32 1.0, %v34
    %v36 = vmul.f32 %v33, %v35
    %v37 = vadd.f32 %v33, %v36
    %vm38 = vweird.f32 %v33
    %v39 = vsel %vm38, %v33, %v37
    %v40 = vmul.f32 %v31, %v39
    %v41 = vmul.f32 %v32, %v39
    %42 = vst [vmem:[#allocation5] sm:$0xff] %v40
    %43 = vst [vmem:[#allocation5 + $0x8] sm:$0xff] %v41
    // Predicated region
    $region10: #{tpu_custom_call.1} parent=1 // pred_check
      _
    $region11: #{tpu_custom_call.1} parent=1 // pred_check_branch
      %45 = sbr.rel (0) target = $region13
    $region12: #{tpu_custom_call.1} parent=1 // pred_region
      %47 = vsyncadd [#allocation4], 0
      %s49 = sshll.u32 [#allocation5], 4
      %s50 = int_to_ptr.vmem [resolvable:$true] %s49
      %s51 = sshll.u32 %s1, 4
      %s52 = int_to_ptr.hbm [resolvable:$true] %s51
      %54 = dma.vmem_to_hbm [thread:$0]  %s50, 256, %s52, [#allocation4]
    $region13: #{tpu_custom_call.1} parent=1 // pred_fallthru
      _
    // Predicated region
    $region14: #{tpu_custom_call.1} parent=1 // pred_check
      _
    $region15: #{tpu_custom_call.1} parent=1 // pred_check_branch
      %56 = sbr.rel (0) target = $region17
    $region16: #{tpu_custom_call.1} parent=1 // pred_region
      %58 = dma.done [#allocation4], 256
    $region17: #{tpu_custom_call.1} parent=1 // pred_fallthru
      _
    %59 = vsyncpa [#allocation3], 1
    %60 = vsyncpa [#allocation4], 1

</llo_original>
